<compile_context>
chip_gen: v7x
topology: tpu7x:2x2x1
jax: 0.10.0
libtpu: 0.0.40
codegen_flags: <defaults>
</compile_context>

<pallas_src>
from functools import partial

import jax
import jax.numpy as jnp
from jax.experimental import pallas as pl
from jax.experimental.pallas import tpu as pltpu


def _round_up(x, m):
    return ((x + m - 1) // m) * m


def _pick_tm(m, cap=2048, min_steps=4):
    """8-aligned row tile; aims for >= min_steps grid steps, capped at `cap`."""
    tm = _round_up(max(1, -(-m // min_steps)), 8)
    return max(8, min(cap, tm))


def temple_voice_kernel(x_ref, w1_ref, b1_ref, w2_ref, b2_ref, w3_ref, b3_ref,
                        out_ref):
    """Fused MLP hot path: (bf16 matmul, f32 acc) -> bias -> relu, three layers."""
    x = x_ref[...].astype(jnp.bfloat16)                       # (TM, V) cast on VPU

    h = jnp.dot(x, w1_ref[...], preferred_element_type=jnp.float32)
    h = jnp.maximum(h + b1_ref[...], 0.0)

    h = jnp.dot(h.astype(jnp.bfloat16), w2_ref[...],
                preferred_element_type=jnp.float32)
    h = jnp.maximum(h + b2_ref[...], 0.0)

    out = jnp.dot(h.astype(jnp.bfloat16), w3_ref[...],
                  preferred_element_type=jnp.float32)
    out_ref[...] = (out + b3_ref[...]).astype(out_ref.dtype)


@partial(jax.jit, static_argnames=("out_dtype",))
def temple_voice_forward(x, params, out_dtype=None):
    """x: [B, T, V] float32 -> [B, T, glyph_vocab_size] (f32 by default)."""
    w1, b1, w2, b2, w3, b3 = params
    B, T, V = x.shape
    H = w1.shape[1]
    N = w3.shape[1]
    out_dtype = x.dtype if out_dtype is None else out_dtype

    M = B * T
    TM = _pick_tm(M)
    grid_steps = (M + TM - 1) // TM        # cdiv grid; last block may be partial

    x2d = x.reshape(M, V)                  # free reshape, no pad, no cast

    # bf16 MXU operands (tiny, VMEM-resident); biases stay f32.
    w1_bf = w1.astype(jnp.bfloat16)
    w2_bf = w2.astype(jnp.bfloat16)
    w3_bf = w3.astype(jnp.bfloat16)

    out2d = pl.pallas_call(
        temple_voice_kernel,
        out_shape=jax.ShapeDtypeStruct((M, N), out_dtype),
        grid=(grid_steps,),
        in_specs=[
            pl.BlockSpec((TM, V), lambda i: (i, 0)),      # x tile, streamed
            pl.BlockSpec((V, H), lambda i: (0, 0)),       # w1 (VMEM-resident)
            pl.BlockSpec((1, H), lambda i: (0, 0)),       # b1
            pl.BlockSpec((H, H), lambda i: (0, 0)),       # w2
            pl.BlockSpec((1, H), lambda i: (0, 0)),       # b2
            pl.BlockSpec((H, N), lambda i: (0, 0)),       # w3
            pl.BlockSpec((1, N), lambda i: (0, 0)),       # b3
        ],
        out_specs=pl.BlockSpec((TM, N), lambda i: (i, 0)),
        compiler_params=pltpu.CompilerParams(
            dimension_semantics=("parallel",),            # shard row tiles on v7x
            vmem_limit_bytes=32 * 1024 * 1024,
        ),
    )(x2d, w1_bf, b1, w2_bf, b2, w3_bf, b3)

    return out2d.reshape(B, T, N)


def init_temple_voice_params(key, input_dim=6, hidden_dim=64,
                             glyph_vocab_size=100, dtype=jnp.float32):
    """Deterministic init mirroring nn.Linear default (uniform +/- 1/sqrt(fan_in)).

    Weights are stored transposed relative to PyTorch: (in_features, out_features).
    """
    ks = jax.random.split(key, 6)

    def linear(kw, kb, fan_in, fan_out):
        bound = 1.0 / jnp.sqrt(jnp.asarray(fan_in, dtype))
        w = jax.random.uniform(kw, (fan_in, fan_out), dtype, -bound, bound)
        b = jax.random.uniform(kb, (1, fan_out), dtype, -bound, bound)
        return w, b

    w1, b1 = linear(ks[0], ks[1], input_dim, hidden_dim)
    w2, b2 = linear(ks[2], ks[3], hidden_dim, hidden_dim)
    w3, b3 = linear(ks[4], ks[5], hidden_dim, glyph_vocab_size)
    return (w1, b1, w2, b2, w3, b3)


def temple_voice_reference_f32(x, params):
    """Full-f32 reference of the original forward pass."""
    w1, b1, w2, b2, w3, b3 = params
    h = jnp.maximum(x @ w1 + b1[0], 0.0)
    h = jnp.maximum(h @ w2 + b2[0], 0.0)
    return h @ w3 + b3[0]


def temple_voice_reference_bf16(x, params):
    """Precision-matched reference: bf16 MXU operands, f32 accumulation."""
    w1, b1, w2, b2, w3, b3 = params
    bf = jnp.bfloat16
    h = jnp.dot(x.astype(bf), w1.astype(bf),
                preferred_element_type=jnp.float32) + b1[0]
    h = jnp.maximum(h, 0.0)
    h = jnp.dot(h.astype(bf), w2.astype(bf),
                preferred_element_type=jnp.float32) + b2[0]
    h = jnp.maximum(h, 0.0)
    return jnp.dot(h.astype(bf), w3.astype(bf),
                   preferred_element_type=jnp.float32) + b3[0]


if __name__ == "__main__":
    key = jax.random.PRNGKey(0)
    k_param, k_x, k_x2 = jax.random.split(key, 3)

    B, T, V = 2, 8, 6          # x: [B, T, V] raw logits, V == input_dim
    hidden_dim = 64
    glyph_vocab_size = 100

    params = init_temple_voice_params(
        k_param, input_dim=V, hidden_dim=hidden_dim,
        glyph_vocab_size=glyph_vocab_size)

    # --- main case: B*T divisible by the row tile ---
    x = jax.random.normal(k_x, (B, T, V), dtype=jnp.float32)
    out = jax.block_until_ready(temple_voice_forward(x, params))
    assert out.shape == (B, T, glyph_vocab_size)
    assert out.dtype == jnp.float32

    ref_bf16 = temple_voice_reference_bf16(x, params)
    assert jnp.allclose(out, ref_bf16, atol=1e-2, rtol=1e-2)
    ref_f32 = temple_voice_reference_f32(x, params)
    assert jnp.allclose(out, ref_f32, atol=1e-1, rtol=1e-1)

    # --- ragged case: B*T = 21 not divisible by TM (partial last block) ---
    x2 = jax.random.normal(k_x2, (3, 7, V), dtype=jnp.float32)
    out2 = jax.block_until_ready(temple_voice_forward(x2, params))
    assert out2.shape == (3, 7, glyph_vocab_size)
    ref2 = temple_voice_reference_bf16(x2, params)
    assert jnp.allclose(out2, ref2, atol=1e-2, rtol=1e-2)

    # --- optional bf16 output path (halves writeback traffic) ---
    out_bf = jax.block_until_ready(
        temple_voice_forward(x, params, out_dtype=jnp.bfloat16))
    assert out_bf.dtype == jnp.bfloat16
    assert jnp.allclose(out_bf.astype(jnp.float32), ref_bf16, atol=5e-2, rtol=5e-2)

    print("KERNEL_OK")
</pallas_src>

<mosaic_0001>
module attributes {stable_mosaic.version = 11 : i64} {
  func.func @temple_voice_kernel(%arg0: i32, %arg1: memref<8x6xf32, #tpu.memory_space<vmem>>, %arg2: memref<6x64xbf16, #tpu.memory_space<vmem>>, %arg3: memref<1x64xf32, #tpu.memory_space<vmem>>, %arg4: memref<64x64xbf16, #tpu.memory_space<vmem>>, %arg5: memref<1x64xf32, #tpu.memory_space<vmem>>, %arg6: memref<64x100xbf16, #tpu.memory_space<vmem>>, %arg7: memref<1x100xf32, #tpu.memory_space<vmem>>, %arg8: memref<8x100xf32, #tpu.memory_space<vmem>>) attributes {dimension_semantics = [#tpu.dimension_semantics<parallel>], iteration_bounds = array<i64: 2>, scalar_prefetch = 0 : i64, scratch_operands = 0 : i64, tpu.core_type = #tpu.core_type<tc>, window_params = [{transform_indices = @transform_0, window_bounds = array<i64: 8, 6>}, {pipeline_mode = #tpu.pipeline_mode<synchronous>, transform_indices = @transform_1, window_bounds = array<i64: 6, 64>}, {pipeline_mode = #tpu.pipeline_mode<synchronous>, transform_indices = @transform_2, window_bounds = array<i64: 1, 64>}, {pipeline_mode = #tpu.pipeline_mode<synchronous>, transform_indices = @transform_3, window_bounds = array<i64: 64, 64>}, {pipeline_mode = #tpu.pipeline_mode<synchronous>, transform_indices = @transform_4, window_bounds = array<i64: 1, 64>}, {pipeline_mode = #tpu.pipeline_mode<synchronous>, transform_indices = @transform_5, window_bounds = array<i64: 64, 100>}, {pipeline_mode = #tpu.pipeline_mode<synchronous>, transform_indices = @transform_6, window_bounds = array<i64: 1, 100>}, {transform_indices = @transform_7, window_bounds = array<i64: 8, 100>}]} {
    %c0 = arith.constant 0 : index
    %c0_0 = arith.constant 0 : index
    %0 = vector.load %arg1[%c0, %c0_0] : memref<8x6xf32, #tpu.memory_space<vmem>>, vector<8x6xf32>
    %1 = arith.truncf %0 : vector<8x6xf32> to vector<8x6xbf16>
    %c0_1 = arith.constant 0 : index
    %c0_2 = arith.constant 0 : index
    %2 = vector.load %arg2[%c0_1, %c0_2] : memref<6x64xbf16, #tpu.memory_space<vmem>>, vector<6x64xbf16>
    %cst = arith.constant dense<0.000000e+00> : vector<8x64xf32>
    %3 = tpu.matmul %1, %2, %cst {dimension_numbers = #tpu.dot_dimension_numbers<[1], [0], [0], [1], [0, 0, 1, 1], [], []>} : vector<8x6xbf16>, vector<6x64xbf16>, vector<8x64xf32> -> vector<8x64xf32>
    %c0_3 = arith.constant 0 : index
    %c0_4 = arith.constant 0 : index
    %4 = vector.load %arg3[%c0_3, %c0_4] : memref<1x64xf32, #tpu.memory_space<vmem>>, vector<1x64xf32>
    %5 = vector.broadcast %4 : vector<1x64xf32> to vector<8x64xf32>
    %6 = arith.addf %3, %5 : vector<8x64xf32>
    %cst_5 = arith.constant 0.000000e+00 : f32
    %7 = vector.broadcast %cst_5 : f32 to vector<8x64xf32>
    %8 = arith.maximumf %6, %7 : vector<8x64xf32>
    %9 = arith.truncf %8 : vector<8x64xf32> to vector<8x64xbf16>
    %c0_6 = arith.constant 0 : index
    %c0_7 = arith.constant 0 : index
    %10 = vector.load %arg4[%c0_6, %c0_7] : memref<64x64xbf16, #tpu.memory_space<vmem>>, vector<64x64xbf16>
    %cst_8 = arith.constant dense<0.000000e+00> : vector<8x64xf32>
    %11 = tpu.matmul %9, %10, %cst_8 {dimension_numbers = #tpu.dot_dimension_numbers<[1], [0], [0], [1], [0, 0, 1, 1], [], []>} : vector<8x64xbf16>, vector<64x64xbf16>, vector<8x64xf32> -> vector<8x64xf32>
    %c0_9 = arith.constant 0 : index
    %c0_10 = arith.constant 0 : index
    %12 = vector.load %arg5[%c0_9, %c0_10] : memref<1x64xf32, #tpu.memory_space<vmem>>, vector<1x64xf32>
    %13 = vector.broadcast %12 : vector<1x64xf32> to vector<8x64xf32>
    %14 = arith.addf %11, %13 : vector<8x64xf32>
    %cst_11 = arith.constant 0.000000e+00 : f32
    %15 = vector.broadcast %cst_11 : f32 to vector<8x64xf32>
    %16 = arith.maximumf %14, %15 : vector<8x64xf32>
    %17 = arith.truncf %16 : vector<8x64xf32> to vector<8x64xbf16>
    %c0_12 = arith.constant 0 : index
    %c0_13 = arith.constant 0 : index
    %18 = vector.load %arg6[%c0_12, %c0_13] : memref<64x100xbf16, #tpu.memory_space<vmem>>, vector<64x100xbf16>
    %cst_14 = arith.constant dense<0.000000e+00> : vector<8x100xf32>
    %19 = tpu.matmul %17, %18, %cst_14 {dimension_numbers = #tpu.dot_dimension_numbers<[1], [0], [0], [1], [0, 0, 1, 1], [], []>} : vector<8x64xbf16>, vector<64x100xbf16>, vector<8x100xf32> -> vector<8x100xf32>
    %c0_15 = arith.constant 0 : index
    %c0_16 = arith.constant 0 : index
    %20 = vector.load %arg7[%c0_15, %c0_16] : memref<1x100xf32, #tpu.memory_space<vmem>>, vector<1x100xf32>
    %21 = vector.broadcast %20 : vector<1x100xf32> to vector<8x100xf32>
    %22 = arith.addf %19, %21 : vector<8x100xf32>
    %c0_17 = arith.constant 0 : index
    %c0_18 = arith.constant 0 : index
    %23 = vector.load %arg8[%c0_17, %c0_18] : memref<8x100xf32, #tpu.memory_space<vmem>>, vector<8x100xf32>
    tpu.vector_store %arg8[%c0_17, %c0_18], %22 {strides = array<i32>} : memref<8x100xf32, #tpu.memory_space<vmem>>, vector<8x100xf32>,
    return
  }
  func.func @transform_0(%arg0: i32) -> (i32, i32) {
    %c0_i32 = arith.constant 0 : i32
    %c0_i32_0 = arith.constant 0 : i32
    return %arg0, %c0_i32 : i32, i32
  }
  func.func @transform_1(%arg0: i32) -> (i32, i32) {
    %c0_i32 = arith.constant 0 : i32
    %c0_i32_0 = arith.constant 0 : i32
    %c0_i32_1 = arith.constant 0 : i32
    return %c0_i32, %c0_i32_0 : i32, i32
  }
  func.func @transform_2(%arg0: i32) -> (i32, i32) {
    %c0_i32 = arith.constant 0 : i32
    %c0_i32_0 = arith.constant 0 : i32
    %c0_i32_1 = arith.constant 0 : i32
    return %c0_i32, %c0_i32_0 : i32, i32
  }
  func.func @transform_3(%arg0: i32) -> (i32, i32) {
    %c0_i32 = arith.constant 0 : i32
    %c0_i32_0 = arith.constant 0 : i32
    %c0_i32_1 = arith.constant 0 : i32
    return %c0_i32, %c0_i32_0 : i32, i32
  }
  func.func @transform_4(%arg0: i32) -> (i32, i32) {
    %c0_i32 = arith.constant 0 : i32
    %c0_i32_0 = arith.constant 0 : i32
    %c0_i32_1 = arith.constant 0 : i32
    return %c0_i32, %c0_i32_0 : i32, i32
  }
  func.func @transform_5(%arg0: i32) -> (i32, i32) {
    %c0_i32 = arith.constant 0 : i32
    %c0_i32_0 = arith.constant 0 : i32
    %c0_i32_1 = arith.constant 0 : i32
    return %c0_i32, %c0_i32_0 : i32, i32
  }
  func.func @transform_6(%arg0: i32) -> (i32, i32) {
    %c0_i32 = arith.constant 0 : i32
    %c0_i32_0 = arith.constant 0 : i32
    %c0_i32_1 = arith.constant 0 : i32
    return %c0_i32, %c0_i32_0 : i32, i32
  }
  func.func @transform_7(%arg0: i32) -> (i32, i32) {
    %c0_i32 = arith.constant 0 : i32
    %c0_i32_0 = arith.constant 0 : i32
    return %arg0, %c0_i32 : i32, i32
  }
}

</mosaic_0001>

<llo_original>
// kernel: temple_voice_forward.1
$region0: #{temple_voice_forward.1}
  #allocation0 [shape = 'u32[]', space=smem, size = 0x4, offset = 0x4, fixed_abs, tag = 'smem constant byte address 0x4 - core index']
  #allocation1 [shape = 'u32[144,128]{1,0:T(1,128)}', space=vmem, size = 0x12000, scoped, tag = 'internal scratch']
  %s0 = inlined_call_operand.vmem [shape: f32[16,6], index: 0, kind: input, shape index: {}]
  %s1 = inlined_call_operand.vmem [shape: bf16[6,64], index: 1, kind: input, shape index: {}]
  %s2 = inlined_call_operand.vmem [shape: f32[1,64], index: 2, kind: input, shape index: {}]
  %s3 = inlined_call_operand.vmem [shape: bf16[64,64], index: 3, kind: input, shape index: {}]
  %s4 = inlined_call_operand.vmem [shape: f32[1,64], index: 4, kind: input, shape index: {}]
  %s5 = inlined_call_operand.vmem [shape: bf16[64,100], index: 5, kind: input, shape index: {}]
  %s6 = inlined_call_operand.vmem [shape: f32[1,100], index: 6, kind: input, shape index: {}]
  %s7 = inlined_call_operand.hbm [shape: f32[16,100], index: 7, kind: output, shape index: {}]
  %s8 = sld [smem:[#allocation0]]
  $region61: #{temple_voice_forward.1} parent=0
    _
  %s10 = ssub.s32 1, %s8
  %s11 = scalar_select 0, %s10, %s8
  $region1: #{temple_voice_forward.1} parent=0
    #allocation2 [shape = 'u8[8192]{0}', space=vmem, size = 0x2000, scoped, tag = 'output window, operand 0']
    #allocation3 [shape = 's32[2]{0}', space=sflag, size = 0x8, scoped, tag = 'scoped memory for temple_voice_forward.1']
    %12 = vsyncpa [#allocation3], 0
    %s13 = scalar_lea.sflag [#allocation3], 1
    %14 = vsyncpa %s13, 0
    loop: start=0, step=1, limit=4
    $region2: #{temple_voice_forward.1} parent=1 // loop_pre_header
      _
    $region3: #{temple_voice_forward.1} parent=1 // loop_header
      %s16 = sphi 0, %s20
      %p17 = scmp.ge.s32.totalorder %s16, 4
      %s26 = sphi 0, %s28
      %s29 = sphi 0, %s26
      %s30 = sphi 0, %s29
      %s46 = sphi 0, %s30
      %s50 = sphi 0, %s50
      %s52 = sphi 0, %s50
      %s53 = sphi 0, %s52
      %s67 = sphi 0, %s53
      %s71 = sphi 0, %s71
      %s73 = sphi 0, %s71
      %s74 = sphi 0, %s73
      %s88 = sphi 0, %s74
      %s92 = sphi 0, %s92
      %s94 = sphi 0, %s92
      %s95 = sphi 0, %s94
      %s109 = sphi 0, %s95
      %s113 = sphi 0, %s113
      %s115 = sphi 0, %s113
      %s116 = sphi 0, %s115
      %s130 = sphi 0, %s116
      %s134 = sphi 0, %s134
      %s136 = sphi 0, %s134
      %s137 = sphi 0, %s136
      %s151 = sphi 0, %s137
      %s155 = sphi 0, %s155
      %s157 = sphi 0, %s155
      %s158 = sphi 0, %s157
      %s172 = sphi 0, %s158
      %s178 = sphi 0, %s180
      %s181 = sphi 0, %s178
      %s182 = sphi 0, %s181
      %s198 = sphi 0, %s182
    $region4: #{temple_voice_forward.1} parent=1 // loop_header_branch
      %19 = sbr.rel (%p17) target = $region8
    $region5: #{temple_voice_forward.1} parent=1 // loop_body
      %s21 = ssub.s32 %s16, 1
      %s22 = ssub.s32 %s16, 2
      %s23 = sadd.s32 %s16, 1
      %s24 = ssub.s32 %s16, %s23
      %p25 = scmp.eq.s32.totalorder %s24, 0
      %s27 = sadd.s32 %s26, 1
      %s28 = scalar_select %p25, %s26, %s27
      %p31 = pneg %p25
      %p32 = scmp.eq.s32.totalorder %s16, 1
      %p33 = por %p31, %p32
      %p34 = scmp.ne.s32.totalorder %s26, %s29
      %p35 = scmp.eq.s32.totalorder %s16, 0
      %p36 = por %p34, %p35
      %p37 = scmp.ne.s32.totalorder %s26, %s29
      %p38 = scmp.eq.s32.totalorder %s21, 1
      %p39 = por %p37, %p38
      %p40 = scmp.ne.s32.totalorder %s29, %s30
      %p41 = scmp.eq.s32.totalorder %s21, 0
      %p42 = por %p40, %p41
      %p43 = scmp.ne.s32.totalorder %s29, %s30
      %p44 = scmp.eq.s32.totalorder %s22, 1
      %p45 = por %p43, %p44
      %p47 = scmp.ne.s32.totalorder %s30, %s46
      %p48 = scmp.eq.s32.totalorder %s22, 0
      %p49 = por %p47, %p48
      %s51 = sadd.s32 %s50, 1
      %p54 = scmp.eq.s32.totalorder %s16, 1
      %p55 = scmp.ne.s32.totalorder %s50, %s52
      %p56 = scmp.eq.s32.totalorder %s16, 0
      %p57 = por %p55, %p56
      %p58 = scmp.ne.s32.totalorder %s50, %s52
      %p59 = scmp.eq.s32.totalorder %s21, 1
      %p60 = por %p58, %p59
      %p61 = scmp.ne.s32.totalorder %s52, %s53
      %p62 = scmp.eq.s32.totalorder %s21, 0
      %p63 = por %p61, %p62
      %p64 = scmp.ne.s32.totalorder %s52, %s53
      %p65 = scmp.eq.s32.totalorder %s22, 1
      %p66 = por %p64, %p65
      %p68 = scmp.ne.s32.totalorder %s53, %s67
      %p69 = scmp.eq.s32.totalorder %s22, 0
      %p70 = por %p68, %p69
      %s72 = sadd.s32 %s71, 1
      %p75 = scmp.eq.s32.totalorder %s16, 1
      %p76 = scmp.ne.s32.totalorder %s71, %s73
      %p77 = scmp.eq.s32.totalorder %s16, 0
      %p78 = por %p76, %p77
      %p79 = scmp.ne.s32.totalorder %s71, %s73
      %p80 = scmp.eq.s32.totalorder %s21, 1
      %p81 = por %p79, %p80
      %p82 = scmp.ne.s32.totalorder %s73, %s74
      %p83 = scmp.eq.s32.totalorder %s21, 0
      %p84 = por %p82, %p83
      %p85 = scmp.ne.s32.totalorder %s73, %s74
      %p86 = scmp.eq.s32.totalorder %s22, 1
      %p87 = por %p85, %p86
      %p89 = scmp.ne.s32.totalorder %s74, %s88
      %p90 = scmp.eq.s32.totalorder %s22, 0
      %p91 = por %p89, %p90
      %s93 = sadd.s32 %s92, 1
      %p96 = scmp.eq.s32.totalorder %s16, 1
      %p97 = scmp.ne.s32.totalorder %s92, %s94
      %p98 = scmp.eq.s32.totalorder %s16, 0
      %p99 = por %p97, %p98
      %p100 = scmp.ne.s32.totalorder %s92, %s94
      %p101 = scmp.eq.s32.totalorder %s21, 1
      %p102 = por %p100, %p101
      %p103 = scmp.ne.s32.totalorder %s94, %s95
      %p104 = scmp.eq.s32.totalorder %s21, 0
      %p105 = por %p103, %p104
      %p106 = scmp.ne.s32.totalorder %s94, %s95
      %p107 = scmp.eq.s32.totalorder %s22, 1
      %p108 = por %p106, %p107
      %p110 = scmp.ne.s32.totalorder %s95, %s109
      %p111 = scmp.eq.s32.totalorder %s22, 0
      %p112 = por %p110, %p111
      %s114 = sadd.s32 %s113, 1
      %p117 = scmp.eq.s32.totalorder %s16, 1
      %p118 = scmp.ne.s32.totalorder %s113, %s115
      %p119 = scmp.eq.s32.totalorder %s16, 0
      %p120 = por %p118, %p119
      %p121 = scmp.ne.s32.totalorder %s113, %s115
      %p122 = scmp.eq.s32.totalorder %s21, 1
      %p123 = por %p121, %p122
      %p124 = scmp.ne.s32.totalorder %s115, %s116
      %p125 = scmp.eq.s32.totalorder %s21, 0
      %p126 = por %p124, %p125
      %p127 = scmp.ne.s32.totalorder %s115, %s116
      %p128 = scmp.eq.s32.totalorder %s22, 1
      %p129 = por %p127, %p128
      %p131 = scmp.ne.s32.totalorder %s116, %s130
      %p132 = scmp.eq.s32.totalorder %s22, 0
      %p133 = por %p131, %p132
      %s135 = sadd.s32 %s134, 1
      %p138 = scmp.eq.s32.totalorder %s16, 1
      %p139 = scmp.ne.s32.totalorder %s134, %s136
      %p140 = scmp.eq.s32.totalorder %s16, 0
      %p141 = por %p139, %p140
      %p142 = scmp.ne.s32.totalorder %s134, %s136
      %p143 = scmp.eq.s32.totalorder %s21, 1
      %p144 = por %p142, %p143
      %p145 = scmp.ne.s32.totalorder %s136, %s137
      %p146 = scmp.eq.s32.totalorder %s21, 0
      %p147 = por %p145, %p146
      %p148 = scmp.ne.s32.totalorder %s136, %s137
      %p149 = scmp.eq.s32.totalorder %s22, 1
      %p150 = por %p148, %p149
      %p152 = scmp.ne.s32.totalorder %s137, %s151
      %p153 = scmp.eq.s32.totalorder %s22, 0
      %p154 = por %p152, %p153
      %s156 = sadd.s32 %s155, 1
      %p159 = scmp.eq.s32.totalorder %s16, 1
      %p160 = scmp.ne.s32.totalorder %s155, %s157
      %p161 = scmp.eq.s32.totalorder %s16, 0
      %p162 = por %p160, %p161
      %p163 = scmp.ne.s32.totalorder %s155, %s157
      %p164 = scmp.eq.s32.totalorder %s21, 1
      %p165 = por %p163, %p164
      %p166 = scmp.ne.s32.totalorder %s157, %s158
      %p167 = scmp.eq.s32.totalorder %s21, 0
      %p168 = por %p166, %p167
      %p169 = scmp.ne.s32.totalorder %s157, %s158
      %p170 = scmp.eq.s32.totalorder %s22, 1
      %p171 = por %p169, %p170
      %p173 = scmp.ne.s32.totalorder %s158, %s172
      %p174 = scmp.eq.s32.totalorder %s22, 0
      %p175 = por %p173, %p174
      %s176 = ssub.s32 %s16, %s23
      %p177 = scmp.eq.s32.totalorder %s176, 0
      %s179 = sadd.s32 %s178, 1
      %s180 = scalar_select %p177, %s178, %s179
      %p183 = pneg %p177
      %p184 = scmp.eq.s32.totalorder %s16, 1
      %p185 = por %p183, %p184
      %p186 = scmp.ne.s32.totalorder %s178, %s181
      %p187 = scmp.eq.s32.totalorder %s16, 0
      %p188 = por %p186, %p187
      %p189 = scmp.ne.s32.totalorder %s178, %s181
      %p190 = scmp.eq.s32.totalorder %s21, 1
      %p191 = por %p189, %p190
      %p192 = scmp.ne.s32.totalorder %s181, %s182
      %p193 = scmp.eq.s32.totalorder %s21, 0
      %p194 = por %p192, %p193
      %p195 = scmp.ne.s32.totalorder %s181, %s182
      %p196 = scmp.eq.s32.totalorder %s22, 1
      %p197 = por %p195, %p196
      %p199 = scmp.ne.s32.totalorder %s182, %s198
      %p200 = scmp.eq.s32.totalorder %s22, 0
      %p201 = por %p199, %p200
      %p202 = scmp.le.s32.totalorder 1, %s16
      %p203 = scmp.lt.s32.totalorder %s16, 3
      %p204 = pnand %p202, %p203
      %p205 = pneg %p204
      // Predicated region
      $region9: #{temple_voice_forward.1} parent=5 // pred_check
        _
      $region10: #{temple_voice_forward.1} parent=5 // pred_check_branch
        %207 = sbr.rel (%p204) target = $region12
      $region11: #{temple_voice_forward.1} parent=5 // pred_region
        %s208 = ssub.s32 %s16, 1
        // Predicated region
        $region13: #{temple_voice_forward.1} parent=11 // pred_check
          %p209 = pneg %p63
        $region14: #{temple_voice_forward.1} parent=11 // pred_check_branch
          %211 = sbr.rel (%p209) target = $region16
        $region15: #{temple_voice_forward.1} parent=11 // pred_region
          _
        $region16: #{temple_voice_forward.1} parent=11 // pred_fallthru
          _
        // Predicated region
        $region17: #{temple_voice_forward.1} parent=11 // pred_check
          %p212 = pneg %p84
        $region18: #{temple_voice_forward.1} parent=11 // pred_check_branch
          %214 = sbr.rel (%p212) target = $region20
        $region19: #{temple_voice_forward.1} parent=11 // pred_region
          _
        $region20: #{temple_voice_forward.1} parent=11 // pred_fallthru
          _
        // Predicated region
        $region21: #{temple_voice_forward.1} parent=11 // pred_check
          %p215 = pneg %p105
        $region22: #{temple_voice_forward.1} parent=11 // pred_check_branch
          %217 = sbr.rel (%p215) target = $region24
        $region23: #{temple_voice_forward.1} parent=11 // pred_region
          _
        $region24: #{temple_voice_forward.1} parent=11 // pred_fallthru
          _
        // Predicated region
        $region25: #{temple_voice_forward.1} parent=11 // pred_check
          %p218 = pneg %p126
        $region26: #{temple_voice_forward.1} parent=11 // pred_check_branch
          %220 = sbr.rel (%p218) target = $region28
        $region27: #{temple_voice_forward.1} parent=11 // pred_region
          _
        $region28: #{temple_voice_forward.1} parent=11 // pred_fallthru
          _
        // Predicated region
        $region29: #{temple_voice_forward.1} parent=11 // pred_check
          %p221 = pneg %p147
        $region30: #{temple_voice_forward.1} parent=11 // pred_check_branch
          %223 = sbr.rel (%p221) target = $region32
        $region31: #{temple_voice_forward.1} parent=11 // pred_region
          _
        $region32: #{temple_voice_forward.1} parent=11 // pred_fallthru
          _
        // Predicated region
        $region33: #{temple_voice_forward.1} parent=11 // pred_check
          %p224 = pneg %p168
        $region34: #{temple_voice_forward.1} parent=11 // pred_check_branch
          %226 = sbr.rel (%p224) target = $region36
        $region35: #{temple_voice_forward.1} parent=11 // pred_region
          _
        $region36: #{temple_voice_forward.1} parent=11 // pred_fallthru
          _
      $region12: #{temple_voice_forward.1} parent=5 // pred_fallthru
        _
      %p227 = scmp.lt.s32.totalorder %s16, 2
      // Predicated region
      $region37: #{temple_voice_forward.1} parent=5 // pred_check
        %p228 = pneg %p227
      $region38: #{temple_voice_forward.1} parent=5 // pred_check_branch
        %230 = sbr.rel (%p228) target = $region40
      $region39: #{temple_voice_forward.1} parent=5 // pred_region
        // Predicated region
        $region41: #{temple_voice_forward.1} parent=39 // pred_check
          %p231 = pneg %p36
        $region42: #{temple_voice_forward.1} parent=39 // pred_check_branch
          %233 = sbr.rel (%p231) target = $region44
        $region43: #{temple_voice_forward.1} parent=39 // pred_region
          %p234 = scmp.lt.s32.totalorder %s16, 1
          %s235 = scalar_select %p234, %s16, 1
          %s236 = smul.addr %s235, 8
          %s237 = scalar_lea.vmem %s0, %s236
        $region44: #{temple_voice_forward.1} parent=39 // pred_fallthru
          _
      $region40: #{temple_voice_forward.1} parent=5 // pred_fallthru
        _
      %p238 = scmp.le.s32.totalorder 1, %s16
      %p239 = scmp.lt.s32.totalorder %s16, 3
      %p240 = pnand %p238, %p239
      %p241 = pneg %p240
      // Predicated region
      $region45: #{temple_voice_forward.1} parent=5 // pred_check
        _
      $region46: #{temple_voice_forward.1} parent=5 // pred_check_branch
        %243 = sbr.rel (%p240) target = $region48
      $region47: #{temple_voice_forward.1} parent=5 // pred_region
        %s244 = ssub.s32 %s16, 1
        %p245 = scmp.lt.s32.totalorder %s21, 1
        %s246 = scalar_select %p245, %s21, 1
        %s247 = smul.addr %s246, 8
        %s248 = scalar_lea.vmem %s0, %s247
        %p249 = pneg %p42
        %p250 = pneg %p39
        %p251 = pneg %p63
        %p252 = pneg %p60
        %p253 = pneg %p84
        %p254 = pneg %p81
        %p255 = pneg %p105
        %p256 = pneg %p102
        %p257 = pneg %p126
        %p258 = pneg %p123
        %p259 = pneg %p147
        %p260 = pneg %p144
        %p261 = pneg %p168
        %p262 = pneg %p165
        %p263 = pneg %p194
        %p264 = pneg %p191
        %s265 = sand.u32 %s181, 1
        %s266 = scalar_lea.sflag [#allocation3], %s265
        %s267 = sand.u32 %s181, 1
        %s268 = smul.addr %s267, 8
        %s269 = scalar_lea.vmem [#allocation2], %s268
        %p270 = scmp.lt.s32.totalorder %s21, 1
        %s271 = scalar_select %p270, %s21, 1
        %s272 = smul.addr %s271, 8
        %s273 = scalar_lea.vmem %s0, %s272
        %v275 = vld [vmem:[%s273] sm:$0xff]
        %v276 = vpack.c.bf16 %v275, %v275
        %v277 = vld [vmem:[%s1] sm:$0x7]
        %v278 = vld [vmem:[%s2] sm:$0x1]
        %v280 = vlaneseq
        %v281 = vshrl.u32 %v280, 7
        %v282 = vsub.s32 0, %v281
        %v283 = vrot.slane %v278, %v282
        %vm285 = vcmask 48128
        %v287 = vsel %vm285, %v276, 0
        %vm289 = vcmask 1042432
        %v291 = vsel %vm289, %v277, 0
        %293 = vmatprep.subr.bf16.mxu0 0
        %294 = vmatpush1.bf16.msra.mxu0 %v291
        %295 = vmatprep.subr.bf16.mxu0 0
        %296 = vmatpush1.bf16.msra.mxu0 0
        %297 = vmatprep.subr.bf16.mxu0 0
        %298 = vmatpush1.bf16.msra.mxu0 0
        %299 = vmatprep.subr.bf16.mxu0 0
        %300 = vmatpush1.bf16.msra.mxu0 0
        %301 = vmatprep.subr.bf16.mxu0 0
        %302 = vmatpush1.bf16.msra.mxu0 0
        %303 = vmatprep.subr.bf16.mxu0 0
        %304 = vmatpush1.bf16.msra.mxu0 0
        %305 = vmatprep.subr.bf16.mxu0 0
        %306 = vmatpush1.bf16.msra.mxu0 0
        %307 = vmatprep.subr.bf16.mxu0 0
        %308 = vmatpush1.bf16.msra.mxu0 0
        %309 = vmatprep.subr.bf16.mxu0 0
        %310 = vmatpush1.bf16.msra.mxu0 0
        %311 = vmatprep.subr.bf16.mxu0 0
        %312 = vmatpush1.bf16.msra.mxu0 0
        %313 = vmatprep.subr.bf16.mxu0 0
        %314 = vmatpush1.bf16.msra.mxu0 0
        %315 = vmatprep.subr.bf16.mxu0 0
        %316 = vmatpush1.bf16.msra.mxu0 0
        %317 = vmatprep.subr.bf16.mxu0 0
        %318 = vmatpush1.bf16.msra.mxu0 0
        %319 = vmatprep.subr.bf16.mxu0 0
        %320 = vmatpush1.bf16.msra.mxu0 0
        %321 = vmatprep.subr.bf16.mxu0 0
        %322 = vmatpush1.bf16.msra.mxu0 0
        %323 = vmatprep.subr.bf16.mxu0 0
        %324 = vmatpush1.bf16.msra.mxu0 0
        %325 = vmatprep.mubr.bf16.mxu0 0
        %326 = vmatmul.mubr.bf16.gmra.mrb[0].mxu0 %v287
        %v327 = vpop.f32.mrb[0].mxu0
        %v328 = vadd.f32 %v283, %v327
        %v329 = vpop.f32.mrb[0].mxu0
        %v330 = vpop.f32.mrb[0].mxu0
        %v331 = vpop.f32.mrb[0].mxu0
        %332 = vdwg.mxu0
        %v333 = vmax.f32 %v328, 0.0
        %v334 = vpack.c.bf16 %v333, %v333
        %v335 = vld [vmem:[%s3] sm:$0xf]
        %v336 = vld [vmem:[%s3 + $0x4] sm:$0xf]
        %v337 = vld [vmem:[%s3 + $0x8] sm:$0xf]
        %v338 = vld [vmem:[%s3 + $0xc] sm:$0xf]
        %v339 = vld [vmem:[%s3 + $0x10] sm:$0xf]
        %v340 = vld [vmem:[%s3 + $0x14] sm:$0xf]
        %v341 = vld [vmem:[%s3 + $0x18] sm:$0xf]
        %v342 = vld [vmem:[%s3 + $0x1c] sm:$0xf]
        %v343 = vld [vmem:[%s4] sm:$0x1]
        %v345 = vlaneseq
        %v346 = vshrl.u32 %v345, 7
        %v347 = vsub.s32 0, %v346
        %v348 = vrot.slane %v343, %v347
        %v358 = vunpack.c.l.b16 %v335
        %v359 = vunpack.c.l.b16 %v336
        %v360 = vunpack.c.l.b16 %v337
        %v361 = vunpack.c.l.b16 %v338
        %v362 = vunpack.c.l.b16 %v339
        %v363 = vunpack.c.l.b16 %v340
        %v364 = vunpack.c.l.b16 %v341
        %v365 = vunpack.c.l.b16 %v342
        %v366 = vpack.c.b16 %v359, %v358
        %v367 = vpack.c.b16 %v361, %v360
        %v368 = vpack.c.b16 %v363, %v362
        %v369 = vpack.c.b16 %v365, %v364
        %vm374 = vcmask 523264
        %v376 = vsel %vm374, %v334, 0
        %378 = vmatprep.subr.bf16.mxu0 0
        %379 = vmatpush1.bf16.msra.mxu0 %v366
        %380 = vmatprep.subr.bf16.mxu0 0
        %381 = vmatpush1.bf16.msra.mxu0 %v367
        %382 = vmatprep.subr.bf16.mxu0 0
        %383 = vmatpush1.bf16.msra.mxu0 %v368
        %384 = vmatprep.subr.bf16.mxu0 0
        %385 = vmatpush1.bf16.msra.mxu0 %v369
        %386 = vmatprep.subr.bf16.mxu0 0
        %387 = vmatpush1.bf16.msra.mxu0 0
        %388 = vmatprep.subr.bf16.mxu0 0
        %389 = vmatpush1.bf16.msra.mxu0 0
        %390 = vmatprep.subr.bf16.mxu0 0
        %391 = vmatpush1.bf16.msra.mxu0 0
        %392 = vmatprep.subr.bf16.mxu0 0
        %393 = vmatpush1.bf16.msra.mxu0 0
        %394 = vmatprep.subr.bf16.mxu0 0
        %395 = vmatpush1.bf16.msra.mxu0 0
        %396 = vmatprep.subr.bf16.mxu0 0
        %397 = vmatpush1.bf16.msra.mxu0 0
        %398 = vmatprep.subr.bf16.mxu0 0
        %399 = vmatpush1.bf16.msra.mxu0 0
        %400 = vmatprep.subr.bf16.mxu0 0
        %401 = vmatpush1.bf16.msra.mxu0 0
        %402 = vmatprep.subr.bf16.mxu0 0
        %403 = vmatpush1.bf16.msra.mxu0 0
        %404 = vmatprep.subr.bf16.mxu0 0
        %405 = vmatpush1.bf16.msra.mxu0 0
        %406 = vmatprep.subr.bf16.mxu0 0
        %407 = vmatpush1.bf16.msra.mxu0 0
        %408 = vmatprep.subr.bf16.mxu0 0
        %409 = vmatpush1.bf16.msra.mxu0 0
        %410 = vmatprep.mubr.bf16.mxu0 0
        %411 = vmatmul.mubr.bf16.gmra.mrb[0].mxu0 %v376
        %v412 = vpop.f32.mrb[0].mxu0
        %v413 = vadd.f32 %v348, %v412
        %v414 = vpop.f32.mrb[0].mxu0
        %v415 = vpop.f32.mrb[0].mxu0
        %v416 = vpop.f32.mrb[0].mxu0
        %417 = vdwg.mxu0
        %v418 = vmax.f32 %v413, 0.0
        %v419 = vpack.c.bf16 %v418, %v418
        %v420 = vld [vmem:[%s5] sm:$0xf]
        %v421 = vld [vmem:[%s5 + $0x4] sm:$0xf]
        %v422 = vld [vmem:[%s5 + $0x8] sm:$0xf]
        %v423 = vld [vmem:[%s5 + $0xc] sm:$0xf]
        %v424 = vld [vmem:[%s5 + $0x10] sm:$0xf]
        %v425 = vld [vmem:[%s5 + $0x14] sm:$0xf]
        %v426 = vld [vmem:[%s5 + $0x18] sm:$0xf]
        %v427 = vld [vmem:[%s5 + $0x1c] sm:$0xf]
        %v428 = vld [vmem:[%s6] sm:$0x1]
        %v430 = vlaneseq
        %v431 = vshrl.u32 %v430, 7
        %v432 = vsub.s32 0, %v431
        %v433 = vrot.slane %v428, %v432
        %v443 = vunpack.c.l.b16 %v420
        %v444 = vunpack.c.l.b16 %v421
        %v445 = vunpack.c.l.b16 %v422
        %v446 = vunpack.c.l.b16 %v423
        %v447 = vunpack.c.l.b16 %v424
        %v448 = vunpack.c.l.b16 %v425
        %v449 = vunpack.c.l.b16 %v426
        %v450 = vunpack.c.l.b16 %v427
        %v451 = vpack.c.b16 %v444, %v443
        %v452 = vpack.c.b16 %v446, %v445
        %v453 = vpack.c.b16 %v448, %v447
        %v454 = vpack.c.b16 %v450, %v449
        %v460 = vsel %vm374, %v419, 0
        %462 = vmatprep.subr.bf16.mxu0 0
        %463 = vmatpush1.bf16.msra.mxu0 %v451
        %464 = vmatprep.subr.bf16.mxu0 0
        %465 = vmatpush1.bf16.msra.mxu0 %v452
        %466 = vmatprep.subr.bf16.mxu0 0
        %467 = vmatpush1.bf16.msra.mxu0 %v453
        %468 = vmatprep.subr.bf16.mxu0 0
        %469 = vmatpush1.bf16.msra.mxu0 %v454
        %470 = vmatprep.subr.bf16.mxu0 0
        %471 = vmatpush1.bf16.msra.mxu0 0
        %472 = vmatprep.subr.bf16.mxu0 0
        %473 = vmatpush1.bf16.msra.mxu0 0
        %474 = vmatprep.subr.bf16.mxu0 0
        %475 = vmatpush1.bf16.msra.mxu0 0
        %476 = vmatprep.subr.bf16.mxu0 0
        %477 = vmatpush1.bf16.msra.mxu0 0
        %478 = vmatprep.subr.bf16.mxu0 0
        %479 = vmatpush1.bf16.msra.mxu0 0
        %480 = vmatprep.subr.bf16.mxu0 0
        %481 = vmatpush1.bf16.msra.mxu0 0
        %482 = vmatprep.subr.bf16.mxu0 0
        %483 = vmatpush1.bf16.msra.mxu0 0
        %484 = vmatprep.subr.bf16.mxu0 0
        %485 = vmatpush1.bf16.msra.mxu0 0
        %486 = vmatprep.subr.bf16.mxu0 0
        %487 = vmatpush1.bf16.msra.mxu0 0
        %488 = vmatprep.subr.bf16.mxu0 0
        %489 = vmatpush1.bf16.msra.mxu0 0
        %490 = vmatprep.subr.bf16.mxu0 0
        %491 = vmatpush1.bf16.msra.mxu0 0
        %492 = vmatprep.subr.bf16.mxu0 0
        %493 = vmatpush1.bf16.msra.mxu0 0
        %494 = vmatprep.mubr.bf16.mxu0 0
        %495 = vmatmul.mubr.bf16.gmra.mrb[0].mxu0 %v460
        %v496 = vpop.f32.mrb[0].mxu0
        %v497 = vadd.f32 %v433, %v496
        %v498 = vpop.f32.mrb[0].mxu0
        %v499 = vpop.f32.mrb[0].mxu0
        %v500 = vpop.f32.mrb[0].mxu0
        %501 = vdwg.mxu0
        %vm502 = vcmask 818176
        %503 = vst.msk [vmem:[%s269] sm:$0xff] %vm502, %v497
        %s504 = sand.u32 %s181, 1
        %s505 = scalar_lea.sflag [#allocation3], %s504
        %s506 = sand.u32 %s181, 1
        %s507 = smul.addr %s506, 8
        %s508 = scalar_lea.vmem [#allocation2], %s507
        // Predicated region
        $region49: #{temple_voice_forward.1} parent=47 // pred_check
          %p509 = pneg %p191
        $region50: #{temple_voice_forward.1} parent=47 // pred_check_branch
          %511 = sbr.rel (%p509) target = $region52
        $region51: #{temple_voice_forward.1} parent=47 // pred_region
          %s513 = ssub.s32 128, 128
          %514 = vsyncadd %s505, %s513
          %s515 = smul.addr %s21, 128
          %s516 = scalar_lea.hbm %s7, %s515
          %s518 = sshll.u32 %s508, 4
          %s519 = int_to_ptr.vmem [resolvable:$true] %s518
          %521 = dma.vmem_to_hbm [thread:$0]  %s519, 128, %s516, %s505
        $region52: #{temple_voice_forward.1} parent=47 // pred_fallthru
          _
      $region48: #{temple_voice_forward.1} parent=5 // pred_fallthru
        _
      %p522 = scmp.le.s32.totalorder 2, %s16
      // Predicated region
      $region53: #{temple_voice_forward.1} parent=5 // pred_check
        %p523 = pneg %p522
      $region54: #{temple_voice_forward.1} parent=5 // pred_check_branch
        %525 = sbr.rel (%p523) target = $region56
      $region55: #{temple_voice_forward.1} parent=5 // pred_region
        %s526 = ssub.s32 %s16, 2
        // Predicated region
        $region57: #{temple_voice_forward.1} parent=55 // pred_check
          %p527 = pneg %p197
        $region58: #{temple_voice_forward.1} parent=55 // pred_check_branch
          %529 = sbr.rel (%p527) target = $region60
        $region59: #{temple_voice_forward.1} parent=55 // pred_region
          %s530 = sand.u32 %s182, 1
          %s531 = scalar_lea.sflag [#allocation3], %s530
          %s532 = sand.u32 %s182, 1
          %s533 = smul.addr %s532, 8
          %s534 = scalar_lea.vmem [#allocation2], %s533
          %535 = dma.done %s531, 128
        $region60: #{temple_voice_forward.1} parent=55 // pred_fallthru
          _
      $region56: #{temple_voice_forward.1} parent=5 // pred_fallthru
        _
    $region6: #{temple_voice_forward.1} parent=1 // loop_footer
      %s20 = sadd.s32 1, %s16
    $region7: #{temple_voice_forward.1} parent=1 // loop_footer_branch
      %15 = sbr.rel target = $region3
    $region8: #{temple_voice_forward.1} parent=1 // loop_exit
      _
    %536 = vsyncpa [#allocation3], 1
    %s537 = scalar_lea.sflag [#allocation3], 1
    %538 = vsyncpa %s537, 1

</llo_original>
